<compile_context>
chip_gen: v7x
topology: tpu7x:2x2x1
jax: 0.10.0
libtpu: 0.0.40
codegen_flags: <defaults>
</compile_context>

<pallas_src>
import jax
import jax.numpy as jnp
from jax.experimental import pallas as pl
from jax.experimental.pallas import tpu as pltpu


def _make_kernel(C, O, H, W):
    def kernel(w_ref, b_ref, x_ref, o_ref):
        """w_ref: SMEM (O, 2C) stacked [wh | ww]; b_ref: SMEM (O,) = bh + bw;
        x_ref: VMEM (C, H, W); o_ref: VMEM (O, H+2, W+2) final padded output."""
        x = x_ref[...]                          # (C, H, W)
        xt = jnp.swapaxes(x, 1, 2)              # per-channel spatial transpose (XLU)
        for o in range(O):                      # static unroll: O = 5
            bias = b_ref[o]                     # scalar from SMEM
            # interior = bias + sum_c wh[o,c]*x[c] + ww[o,c]*x^T[c]   (VPU FMAs)
            acc = jnp.full((H, W), bias, dtype=jnp.float32)
            for c in range(C):                  # static unroll: C = 2
                acc = acc + w_ref[o, c] * x[c]
                acc = acc + w_ref[o, C + c] * xt[c]
            # A padded 1x1 conv puts only the bias on the 1-px border:
            # fill the whole plane with bias, then overwrite the interior.
            o_ref[o, :, :] = jnp.full((H + 2, W + 2), bias, dtype=jnp.float32)
            o_ref[o, 1:H + 1, 1:W + 1] = acc
    return kernel


def model_forward(x, wh, bh, ww, bw):
    """x: (N, C, H, W) float32 (NCHW). Returns (N, 1, O, H+2, W+2)."""
    N, C, H, W = x.shape
    assert H == W, "v1 + v2 requires square spatial dims (as in the reference model)"
    O = wh.shape[0]

    w_cat = jnp.concatenate([wh, ww], axis=1)    # (O, 2C) -- 40 floats, negligible
    b_sum = bh + bw                              # (O,)    -- combined bias

    kernel = _make_kernel(C, O, H, W)
    out = pl.pallas_call(
        kernel,
        out_shape=jax.ShapeDtypeStruct((N, O, H + 2, W + 2), jnp.float32),
        grid_spec=pltpu.PrefetchScalarGridSpec(
            num_scalar_prefetch=2,               # w_cat, b_sum -> SMEM
            grid=(N,),                           # batch axis (size 1 here)
            in_specs=[
                pl.BlockSpec((None, C, H, W), lambda n, w, b: (n, 0, 0, 0)),
            ],
            out_specs=pl.BlockSpec((None, O, H + 2, W + 2),
                                   lambda n, w, b: (n, 0, 0, 0)),
        ),
        compiler_params=pltpu.CompilerParams(
            dimension_semantics=("parallel",)),  # lets v7x split batch across TCs
    )(w_cat, b_sum, x)                           # (N, O, H+2, W+2)

    return out[:, None]                          # torch.unsqueeze(v1 + v2, 1)


def reference_forward(x, wh, bh, ww, bw):
    """Pure-JAX reference mirroring the PyTorch module."""
    yh = jnp.einsum('oc,nchw->nohw', wh, x)                 # conv1_h interior
    yw = jnp.einsum('oc,ncwh->nohw', ww, x)                 # conv1_w on transposed input
    core = yh + yw
    out = jnp.pad(core, ((0, 0), (0, 0), (1, 1), (1, 1)))
    out = out + (bh + bw)[None, :, None, None]
    return out[:, None]


if __name__ == "__main__":
    key = jax.random.PRNGKey(0)
    k_x, k_wh, k_bh, k_ww, k_bw = jax.random.split(key, 5)

    # Shapes of the original spec: x1 = torch.randn(1, 2, 64, 64); Conv2d(2, 5, 1).
    N, C_in, C_out, H, W = 1, 2, 5, 64, 64
    x = jax.random.normal(k_x, (N, C_in, H, W), dtype=jnp.float32)

    # Conv2d(2, 5, 1) -> weight (5,2,1,1) squeezed to (5,2), bias (5,)
    wh = jax.random.normal(k_wh, (C_out, C_in), dtype=jnp.float32) * 0.5
    bh = jax.random.normal(k_bh, (C_out,), dtype=jnp.float32) * 0.1
    ww = jax.random.normal(k_ww, (C_out, C_in), dtype=jnp.float32) * 0.5
    bw = jax.random.normal(k_bw, (C_out,), dtype=jnp.float32) * 0.1

    out = model_forward(x, wh, bh, ww, bw)
    out = jax.block_until_ready(out)

    ref = reference_forward(x, wh, bh, ww, bw)
    assert out.shape == (N, 1, C_out, H + 2, W + 2), out.shape
    assert jnp.allclose(out, ref, atol=1e-5, rtol=1e-5), "mismatch vs reference"

    print("KERNEL_OK")
</pallas_src>

<mosaic_0001>
module attributes {stable_mosaic.version = 11 : i64} {
  func.func @kernel(%arg0: i32, %arg1: memref<5x4xf32, #tpu.memory_space<smem>>, %arg2: memref<5xf32, #tpu.memory_space<smem>>, %arg3: memref<1x2x64x64xf32, #tpu.memory_space<vmem>>, %arg4: memref<1x5x66x66xf32, #tpu.memory_space<vmem>>) attributes {dimension_semantics = [#tpu.dimension_semantics<parallel>], iteration_bounds = array<i64: 1>, scalar_prefetch = 2 : i64, scratch_operands = 0 : i64, tpu.core_type = #tpu.core_type<tc>, window_params = [{transform_indices = @transform_0, window_bounds = array<i64: 1, 2, 64, 64>}, {transform_indices = @transform_1, window_bounds = array<i64: 1, 5, 66, 66>}]} {
    %c0 = arith.constant 0 : index
    %c0_0 = arith.constant 0 : index
    %c0_1 = arith.constant 0 : index
    %c0_2 = arith.constant 0 : index
    %0 = vector.load %arg3[%c0, %c0_0, %c0_1, %c0_2] : memref<1x2x64x64xf32, #tpu.memory_space<vmem>>, vector<1x2x64x64xf32>
    %1 = vector.shape_cast %0 : vector<1x2x64x64xf32> to vector<2x64x64xf32>
    %2 = tpu.transpose %1, [0, 2, 1] : vector<2x64x64xf32> -> vector<2x64x64xf32>
    %c0_3 = arith.constant 0 : index
    %3 = memref.load %arg2[%c0_3] : memref<5xf32, #tpu.memory_space<smem>>
    %4 = vector.broadcast %3 : f32 to vector<64x64xf32>
    %c0_4 = arith.constant 0 : index
    %c0_5 = arith.constant 0 : index
    %5 = memref.load %arg1[%c0_4, %c0_5] : memref<5x4xf32, #tpu.memory_space<smem>>
    %6 = vector.extract_strided_slice %1 {offsets = [0, 0, 0], sizes = [1, 64, 64], strides = [1, 1, 1]} : vector<2x64x64xf32> to vector<1x64x64xf32>
    %7 = vector.shape_cast %6 : vector<1x64x64xf32> to vector<64x64xf32>
    %8 = vector.broadcast %5 : f32 to vector<64x64xf32>
    %9 = arith.mulf %8, %7 : vector<64x64xf32>
    %10 = arith.addf %4, %9 : vector<64x64xf32>
    %c0_6 = arith.constant 0 : index
    %c2 = arith.constant 2 : index
    %11 = memref.load %arg1[%c0_6, %c2] : memref<5x4xf32, #tpu.memory_space<smem>>
    %12 = vector.extract_strided_slice %2 {offsets = [0, 0, 0], sizes = [1, 64, 64], strides = [1, 1, 1]} : vector<2x64x64xf32> to vector<1x64x64xf32>
    %13 = vector.shape_cast %12 : vector<1x64x64xf32> to vector<64x64xf32>
    %14 = vector.broadcast %11 : f32 to vector<64x64xf32>
    %15 = arith.mulf %14, %13 : vector<64x64xf32>
    %16 = arith.addf %10, %15 : vector<64x64xf32>
    %c0_7 = arith.constant 0 : index
    %c1 = arith.constant 1 : index
    %17 = memref.load %arg1[%c0_7, %c1] : memref<5x4xf32, #tpu.memory_space<smem>>
    %18 = vector.extract_strided_slice %1 {offsets = [1, 0, 0], sizes = [1, 64, 64], strides = [1, 1, 1]} : vector<2x64x64xf32> to vector<1x64x64xf32>
    %19 = vector.shape_cast %18 : vector<1x64x64xf32> to vector<64x64xf32>
    %20 = vector.broadcast %17 : f32 to vector<64x64xf32>
    %21 = arith.mulf %20, %19 : vector<64x64xf32>
    %22 = arith.addf %16, %21 : vector<64x64xf32>
    %c0_8 = arith.constant 0 : index
    %c3 = arith.constant 3 : index
    %23 = memref.load %arg1[%c0_8, %c3] : memref<5x4xf32, #tpu.memory_space<smem>>
    %24 = vector.extract_strided_slice %2 {offsets = [1, 0, 0], sizes = [1, 64, 64], strides = [1, 1, 1]} : vector<2x64x64xf32> to vector<1x64x64xf32>
    %25 = vector.shape_cast %24 : vector<1x64x64xf32> to vector<64x64xf32>
    %26 = vector.broadcast %23 : f32 to vector<64x64xf32>
    %27 = arith.mulf %26, %25 : vector<64x64xf32>
    %28 = arith.addf %22, %27 : vector<64x64xf32>
    %29 = vector.broadcast %3 : f32 to vector<66x66xf32>
    %c0_9 = arith.constant 0 : index
    %c0_10 = arith.constant 0 : index
    %c0_11 = arith.constant 0 : index
    %c0_12 = arith.constant 0 : index
    %30 = vector.load %arg4[%c0_9, %c0_10, %c0_11, %c0_12] : memref<1x5x66x66xf32, #tpu.memory_space<vmem>>, vector<1x1x66x66xf32>
    %31 = vector.shape_cast %30 : vector<1x1x66x66xf32> to vector<66x66xf32>
    %32 = vector.shape_cast %29 : vector<66x66xf32> to vector<1x1x66x66xf32>
    tpu.vector_store %arg4[%c0_9, %c0_10, %c0_11, %c0_12], %32 {strides = array<i32>} : memref<1x5x66x66xf32, #tpu.memory_space<vmem>>, vector<1x1x66x66xf32>,
    %c0_13 = arith.constant 0 : index
    %c0_14 = arith.constant 0 : index
    %c1_15 = arith.constant 1 : index
    %c1_16 = arith.constant 1 : index
    %33 = vector.load %arg4[%c0_13, %c0_14, %c1_15, %c1_16] : memref<1x5x66x66xf32, #tpu.memory_space<vmem>>, vector<1x1x64x64xf32>
    %34 = vector.shape_cast %33 : vector<1x1x64x64xf32> to vector<64x64xf32>
    %35 = vector.shape_cast %28 : vector<64x64xf32> to vector<1x1x64x64xf32>
    tpu.vector_store %arg4[%c0_13, %c0_14, %c1_15, %c1_16], %35 {strides = array<i32>} : memref<1x5x66x66xf32, #tpu.memory_space<vmem>>, vector<1x1x64x64xf32>,
    %c1_17 = arith.constant 1 : index
    %36 = memref.load %arg2[%c1_17] : memref<5xf32, #tpu.memory_space<smem>>
    %37 = vector.broadcast %36 : f32 to vector<64x64xf32>
    %c1_18 = arith.constant 1 : index
    %c0_19 = arith.constant 0 : index
    %38 = memref.load %arg1[%c1_18, %c0_19] : memref<5x4xf32, #tpu.memory_space<smem>>
    %39 = vector.extract_strided_slice %1 {offsets = [0, 0, 0], sizes = [1, 64, 64], strides = [1, 1, 1]} : vector<2x64x64xf32> to vector<1x64x64xf32>
    %40 = vector.shape_cast %39 : vector<1x64x64xf32> to vector<64x64xf32>
    %41 = vector.broadcast %38 : f32 to vector<64x64xf32>
    %42 = arith.mulf %41, %40 : vector<64x64xf32>
    %43 = arith.addf %37, %42 : vector<64x64xf32>
    %c1_20 = arith.constant 1 : index
    %c2_21 = arith.constant 2 : index
    %44 = memref.load %arg1[%c1_20, %c2_21] : memref<5x4xf32, #tpu.memory_space<smem>>
    %45 = vector.extract_strided_slice %2 {offsets = [0, 0, 0], sizes = [1, 64, 64], strides = [1, 1, 1]} : vector<2x64x64xf32> to vector<1x64x64xf32>
    %46 = vector.shape_cast %45 : vector<1x64x64xf32> to vector<64x64xf32>
    %47 = vector.broadcast %44 : f32 to vector<64x64xf32>
    %48 = arith.mulf %47, %46 : vector<64x64xf32>
    %49 = arith.addf %43, %48 : vector<64x64xf32>
    %c1_22 = arith.constant 1 : index
    %c1_23 = arith.constant 1 : index
    %50 = memref.load %arg1[%c1_22, %c1_23] : memref<5x4xf32, #tpu.memory_space<smem>>
    %51 = vector.extract_strided_slice %1 {offsets = [1, 0, 0], sizes = [1, 64, 64], strides = [1, 1, 1]} : vector<2x64x64xf32> to vector<1x64x64xf32>
    %52 = vector.shape_cast %51 : vector<1x64x64xf32> to vector<64x64xf32>
    %53 = vector.broadcast %50 : f32 to vector<64x64xf32>
    %54 = arith.mulf %53, %52 : vector<64x64xf32>
    %55 = arith.addf %49, %54 : vector<64x64xf32>
    %c1_24 = arith.constant 1 : index
    %c3_25 = arith.constant 3 : index
    %56 = memref.load %arg1[%c1_24, %c3_25] : memref<5x4xf32, #tpu.memory_space<smem>>
    %57 = vector.extract_strided_slice %2 {offsets = [1, 0, 0], sizes = [1, 64, 64], strides = [1, 1, 1]} : vector<2x64x64xf32> to vector<1x64x64xf32>
    %58 = vector.shape_cast %57 : vector<1x64x64xf32> to vector<64x64xf32>
    %59 = vector.broadcast %56 : f32 to vector<64x64xf32>
    %60 = arith.mulf %59, %58 : vector<64x64xf32>
    %61 = arith.addf %55, %60 : vector<64x64xf32>
    %62 = vector.broadcast %36 : f32 to vector<66x66xf32>
    %c0_26 = arith.constant 0 : index
    %c1_27 = arith.constant 1 : index
    %c0_28 = arith.constant 0 : index
    %c0_29 = arith.constant 0 : index
    %63 = vector.load %arg4[%c0_26, %c1_27, %c0_28, %c0_29] : memref<1x5x66x66xf32, #tpu.memory_space<vmem>>, vector<1x1x66x66xf32>
    %64 = vector.shape_cast %63 : vector<1x1x66x66xf32> to vector<66x66xf32>
    %65 = vector.shape_cast %62 : vector<66x66xf32> to vector<1x1x66x66xf32>
    tpu.vector_store %arg4[%c0_26, %c1_27, %c0_28, %c0_29], %65 {strides = array<i32>} : memref<1x5x66x66xf32, #tpu.memory_space<vmem>>, vector<1x1x66x66xf32>,
    %c0_30 = arith.constant 0 : index
    %c1_31 = arith.constant 1 : index
    %c1_32 = arith.constant 1 : index
    %c1_33 = arith.constant 1 : index
    %66 = vector.load %arg4[%c0_30, %c1_31, %c1_32, %c1_33] : memref<1x5x66x66xf32, #tpu.memory_space<vmem>>, vector<1x1x64x64xf32>
    %67 = vector.shape_cast %66 : vector<1x1x64x64xf32> to vector<64x64xf32>
    %68 = vector.shape_cast %61 : vector<64x64xf32> to vector<1x1x64x64xf32>
    tpu.vector_store %arg4[%c0_30, %c1_31, %c1_32, %c1_33], %68 {strides = array<i32>} : memref<1x5x66x66xf32, #tpu.memory_space<vmem>>, vector<1x1x64x64xf32>,
    %c2_34 = arith.constant 2 : index
    %69 = memref.load %arg2[%c2_34] : memref<5xf32, #tpu.memory_space<smem>>
    %70 = vector.broadcast %69 : f32 to vector<64x64xf32>
    %c2_35 = arith.constant 2 : index
    %c0_36 = arith.constant 0 : index
    %71 = memref.load %arg1[%c2_35, %c0_36] : memref<5x4xf32, #tpu.memory_space<smem>>
    %72 = vector.extract_strided_slice %1 {offsets = [0, 0, 0], sizes = [1, 64, 64], strides = [1, 1, 1]} : vector<2x64x64xf32> to vector<1x64x64xf32>
    %73 = vector.shape_cast %72 : vector<1x64x64xf32> to vector<64x64xf32>
    %74 = vector.broadcast %71 : f32 to vector<64x64xf32>
    %75 = arith.mulf %74, %73 : vector<64x64xf32>
    %76 = arith.addf %70, %75 : vector<64x64xf32>
    %c2_37 = arith.constant 2 : index
    %c2_38 = arith.constant 2 : index
    %77 = memref.load %arg1[%c2_37, %c2_38] : memref<5x4xf32, #tpu.memory_space<smem>>
    %78 = vector.extract_strided_slice %2 {offsets = [0, 0, 0], sizes = [1, 64, 64], strides = [1, 1, 1]} : vector<2x64x64xf32> to vector<1x64x64xf32>
    %79 = vector.shape_cast %78 : vector<1x64x64xf32> to vector<64x64xf32>
    %80 = vector.broadcast %77 : f32 to vector<64x64xf32>
    %81 = arith.mulf %80, %79 : vector<64x64xf32>
    %82 = arith.addf %76, %81 : vector<64x64xf32>
    %c2_39 = arith.constant 2 : index
    %c1_40 = arith.constant 1 : index
    %83 = memref.load %arg1[%c2_39, %c1_40] : memref<5x4xf32, #tpu.memory_space<smem>>
    %84 = vector.extract_strided_slice %1 {offsets = [1, 0, 0], sizes = [1, 64, 64], strides = [1, 1, 1]} : vector<2x64x64xf32> to vector<1x64x64xf32>
    %85 = vector.shape_cast %84 : vector<1x64x64xf32> to vector<64x64xf32>
    %86 = vector.broadcast %83 : f32 to vector<64x64xf32>
    %87 = arith.mulf %86, %85 : vector<64x64xf32>
    %88 = arith.addf %82, %87 : vector<64x64xf32>
    %c2_41 = arith.constant 2 : index
    %c3_42 = arith.constant 3 : index
    %89 = memref.load %arg1[%c2_41, %c3_42] : memref<5x4xf32, #tpu.memory_space<smem>>
    %90 = vector.extract_strided_slice %2 {offsets = [1, 0, 0], sizes = [1, 64, 64], strides = [1, 1, 1]} : vector<2x64x64xf32> to vector<1x64x64xf32>
    %91 = vector.shape_cast %90 : vector<1x64x64xf32> to vector<64x64xf32>
    %92 = vector.broadcast %89 : f32 to vector<64x64xf32>
    %93 = arith.mulf %92, %91 : vector<64x64xf32>
    %94 = arith.addf %88, %93 : vector<64x64xf32>
    %95 = vector.broadcast %69 : f32 to vector<66x66xf32>
    %c0_43 = arith.constant 0 : index
    %c2_44 = arith.constant 2 : index
    %c0_45 = arith.constant 0 : index
    %c0_46 = arith.constant 0 : index
    %96 = vector.load %arg4[%c0_43, %c2_44, %c0_45, %c0_46] : memref<1x5x66x66xf32, #tpu.memory_space<vmem>>, vector<1x1x66x66xf32>
    %97 = vector.shape_cast %96 : vector<1x1x66x66xf32> to vector<66x66xf32>
    %98 = vector.shape_cast %95 : vector<66x66xf32> to vector<1x1x66x66xf32>
    tpu.vector_store %arg4[%c0_43, %c2_44, %c0_45, %c0_46], %98 {strides = array<i32>} : memref<1x5x66x66xf32, #tpu.memory_space<vmem>>, vector<1x1x66x66xf32>,
    %c0_47 = arith.constant 0 : index
    %c2_48 = arith.constant 2 : index
    %c1_49 = arith.constant 1 : index
    %c1_50 = arith.constant 1 : index
    %99 = vector.load %arg4[%c0_47, %c2_48, %c1_49, %c1_50] : memref<1x5x66x66xf32, #tpu.memory_space<vmem>>, vector<1x1x64x64xf32>
    %100 = vector.shape_cast %99 : vector<1x1x64x64xf32> to vector<64x64xf32>
    %101 = vector.shape_cast %94 : vector<64x64xf32> to vector<1x1x64x64xf32>
    tpu.vector_store %arg4[%c0_47, %c2_48, %c1_49, %c1_50], %101 {strides = array<i32>} : memref<1x5x66x66xf32, #tpu.memory_space<vmem>>, vector<1x1x64x64xf32>,
    %c3_51 = arith.constant 3 : index
    %102 = memref.load %arg2[%c3_51] : memref<5xf32, #tpu.memory_space<smem>>
    %103 = vector.broadcast %102 : f32 to vector<64x64xf32>
    %c3_52 = arith.constant 3 : index
    %c0_53 = arith.constant 0 : index
    %104 = memref.load %arg1[%c3_52, %c0_53] : memref<5x4xf32, #tpu.memory_space<smem>>
    %105 = vector.extract_strided_slice %1 {offsets = [0, 0, 0], sizes = [1, 64, 64], strides = [1, 1, 1]} : vector<2x64x64xf32> to vector<1x64x64xf32>
    %106 = vector.shape_cast %105 : vector<1x64x64xf32> to vector<64x64xf32>
    %107 = vector.broadcast %104 : f32 to vector<64x64xf32>
    %108 = arith.mulf %107, %106 : vector<64x64xf32>
    %109 = arith.addf %103, %108 : vector<64x64xf32>
    %c3_54 = arith.constant 3 : index
    %c2_55 = arith.constant 2 : index
    %110 = memref.load %arg1[%c3_54, %c2_55] : memref<5x4xf32, #tpu.memory_space<smem>>
    %111 = vector.extract_strided_slice %2 {offsets = [0, 0, 0], sizes = [1, 64, 64], strides = [1, 1, 1]} : vector<2x64x64xf32> to vector<1x64x64xf32>
    %112 = vector.shape_cast %111 : vector<1x64x64xf32> to vector<64x64xf32>
    %113 = vector.broadcast %110 : f32 to vector<64x64xf32>
    %114 = arith.mulf %113, %112 : vector<64x64xf32>
    %115 = arith.addf %109, %114 : vector<64x64xf32>
    %c3_56 = arith.constant 3 : index
    %c1_57 = arith.constant 1 : index
    %116 = memref.load %arg1[%c3_56, %c1_57] : memref<5x4xf32, #tpu.memory_space<smem>>
    %117 = vector.extract_strided_slice %1 {offsets = [1, 0, 0], sizes = [1, 64, 64], strides = [1, 1, 1]} : vector<2x64x64xf32> to vector<1x64x64xf32>
    %118 = vector.shape_cast %117 : vector<1x64x64xf32> to vector<64x64xf32>
    %119 = vector.broadcast %116 : f32 to vector<64x64xf32>
    %120 = arith.mulf %119, %118 : vector<64x64xf32>
    %121 = arith.addf %115, %120 : vector<64x64xf32>
    %c3_58 = arith.constant 3 : index
    %c3_59 = arith.constant 3 : index
    %122 = memref.load %arg1[%c3_58, %c3_59] : memref<5x4xf32, #tpu.memory_space<smem>>
    %123 = vector.extract_strided_slice %2 {offsets = [1, 0, 0], sizes = [1, 64, 64], strides = [1, 1, 1]} : vector<2x64x64xf32> to vector<1x64x64xf32>
    %124 = vector.shape_cast %123 : vector<1x64x64xf32> to vector<64x64xf32>
    %125 = vector.broadcast %122 : f32 to vector<64x64xf32>
    %126 = arith.mulf %125, %124 : vector<64x64xf32>
    %127 = arith.addf %121, %126 : vector<64x64xf32>
    %128 = vector.broadcast %102 : f32 to vector<66x66xf32>
    %c0_60 = arith.constant 0 : index
    %c3_61 = arith.constant 3 : index
    %c0_62 = arith.constant 0 : index
    %c0_63 = arith.constant 0 : index
    %129 = vector.load %arg4[%c0_60, %c3_61, %c0_62, %c0_63] : memref<1x5x66x66xf32, #tpu.memory_space<vmem>>, vector<1x1x66x66xf32>
    %130 = vector.shape_cast %129 : vector<1x1x66x66xf32> to vector<66x66xf32>
    %131 = vector.shape_cast %128 : vector<66x66xf32> to vector<1x1x66x66xf32>
    tpu.vector_store %arg4[%c0_60, %c3_61, %c0_62, %c0_63], %131 {strides = array<i32>} : memref<1x5x66x66xf32, #tpu.memory_space<vmem>>, vector<1x1x66x66xf32>,
    %c0_64 = arith.constant 0 : index
    %c3_65 = arith.constant 3 : index
    %c1_66 = arith.constant 1 : index
    %c1_67 = arith.constant 1 : index
    %132 = vector.load %arg4[%c0_64, %c3_65, %c1_66, %c1_67] : memref<1x5x66x66xf32, #tpu.memory_space<vmem>>, vector<1x1x64x64xf32>
    %133 = vector.shape_cast %132 : vector<1x1x64x64xf32> to vector<64x64xf32>
    %134 = vector.shape_cast %127 : vector<64x64xf32> to vector<1x1x64x64xf32>
    tpu.vector_store %arg4[%c0_64, %c3_65, %c1_66, %c1_67], %134 {strides = array<i32>} : memref<1x5x66x66xf32, #tpu.memory_space<vmem>>, vector<1x1x64x64xf32>,
    %c4 = arith.constant 4 : index
    %135 = memref.load %arg2[%c4] : memref<5xf32, #tpu.memory_space<smem>>
    %136 = vector.broadcast %135 : f32 to vector<64x64xf32>
    %c4_68 = arith.constant 4 : index
    %c0_69 = arith.constant 0 : index
    %137 = memref.load %arg1[%c4_68, %c0_69] : memref<5x4xf32, #tpu.memory_space<smem>>
    %138 = vector.extract_strided_slice %1 {offsets = [0, 0, 0], sizes = [1, 64, 64], strides = [1, 1, 1]} : vector<2x64x64xf32> to vector<1x64x64xf32>
    %139 = vector.shape_cast %138 : vector<1x64x64xf32> to vector<64x64xf32>
    %140 = vector.broadcast %137 : f32 to vector<64x64xf32>
    %141 = arith.mulf %140, %139 : vector<64x64xf32>
    %142 = arith.addf %136, %141 : vector<64x64xf32>
    %c4_70 = arith.constant 4 : index
    %c2_71 = arith.constant 2 : index
    %143 = memref.load %arg1[%c4_70, %c2_71] : memref<5x4xf32, #tpu.memory_space<smem>>
    %144 = vector.extract_strided_slice %2 {offsets = [0, 0, 0], sizes = [1, 64, 64], strides = [1, 1, 1]} : vector<2x64x64xf32> to vector<1x64x64xf32>
    %145 = vector.shape_cast %144 : vector<1x64x64xf32> to vector<64x64xf32>
    %146 = vector.broadcast %143 : f32 to vector<64x64xf32>
    %147 = arith.mulf %146, %145 : vector<64x64xf32>
    %148 = arith.addf %142, %147 : vector<64x64xf32>
    %c4_72 = arith.constant 4 : index
    %c1_73 = arith.constant 1 : index
    %149 = memref.load %arg1[%c4_72, %c1_73] : memref<5x4xf32, #tpu.memory_space<smem>>
    %150 = vector.extract_strided_slice %1 {offsets = [1, 0, 0], sizes = [1, 64, 64], strides = [1, 1, 1]} : vector<2x64x64xf32> to vector<1x64x64xf32>
    %151 = vector.shape_cast %150 : vector<1x64x64xf32> to vector<64x64xf32>
    %152 = vector.broadcast %149 : f32 to vector<64x64xf32>
    %153 = arith.mulf %152, %151 : vector<64x64xf32>
    %154 = arith.addf %148, %153 : vector<64x64xf32>
    %c4_74 = arith.constant 4 : index
    %c3_75 = arith.constant 3 : index
    %155 = memref.load %arg1[%c4_74, %c3_75] : memref<5x4xf32, #tpu.memory_space<smem>>
    %156 = vector.extract_strided_slice %2 {offsets = [1, 0, 0], sizes = [1, 64, 64], strides = [1, 1, 1]} : vector<2x64x64xf32> to vector<1x64x64xf32>
    %157 = vector.shape_cast %156 : vector<1x64x64xf32> to vector<64x64xf32>
    %158 = vector.broadcast %155 : f32 to vector<64x64xf32>
    %159 = arith.mulf %158, %157 : vector<64x64xf32>
    %160 = arith.addf %154, %159 : vector<64x64xf32>
    %161 = vector.broadcast %135 : f32 to vector<66x66xf32>
    %c0_76 = arith.constant 0 : index
    %c4_77 = arith.constant 4 : index
    %c0_78 = arith.constant 0 : index
    %c0_79 = arith.constant 0 : index
    %162 = vector.load %arg4[%c0_76, %c4_77, %c0_78, %c0_79] : memref<1x5x66x66xf32, #tpu.memory_space<vmem>>, vector<1x1x66x66xf32>
    %163 = vector.shape_cast %162 : vector<1x1x66x66xf32> to vector<66x66xf32>
    %164 = vector.shape_cast %161 : vector<66x66xf32> to vector<1x1x66x66xf32>
    tpu.vector_store %arg4[%c0_76, %c4_77, %c0_78, %c0_79], %164 {strides = array<i32>} : memref<1x5x66x66xf32, #tpu.memory_space<vmem>>, vector<1x1x66x66xf32>,
    %c0_80 = arith.constant 0 : index
    %c4_81 = arith.constant 4 : index
    %c1_82 = arith.constant 1 : index
    %c1_83 = arith.constant 1 : index
    %165 = vector.load %arg4[%c0_80, %c4_81, %c1_82, %c1_83] : memref<1x5x66x66xf32, #tpu.memory_space<vmem>>, vector<1x1x64x64xf32>
    %166 = vector.shape_cast %165 : vector<1x1x64x64xf32> to vector<64x64xf32>
    %167 = vector.shape_cast %160 : vector<64x64xf32> to vector<1x1x64x64xf32>
    tpu.vector_store %arg4[%c0_80, %c4_81, %c1_82, %c1_83], %167 {strides = array<i32>} : memref<1x5x66x66xf32, #tpu.memory_space<vmem>>, vector<1x1x64x64xf32>,
    return
  }
  func.func @transform_0(%arg0: i32, %arg1: memref<5x4xf32, #tpu.memory_space<smem>>, %arg2: memref<5xf32, #tpu.memory_space<smem>>) -> (i32, i32, i32, i32) {
    %c0_i32 = arith.constant 0 : i32
    %c0_i32_0 = arith.constant 0 : i32
    %c0_i32_1 = arith.constant 0 : i32
    %c0_i32_2 = arith.constant 0 : i32
    return %arg0, %c0_i32, %c0_i32_0, %c0_i32_1 : i32, i32, i32, i32
  }
  func.func @transform_1(%arg0: i32, %arg1: memref<5x4xf32, #tpu.memory_space<smem>>, %arg2: memref<5xf32, #tpu.memory_space<smem>>) -> (i32, i32, i32, i32) {
    %c0_i32 = arith.constant 0 : i32
    %c0_i32_0 = arith.constant 0 : i32
    %c0_i32_1 = arith.constant 0 : i32
    %c0_i32_2 = arith.constant 0 : i32
    return %arg0, %c0_i32, %c0_i32_0, %c0_i32_1 : i32, i32, i32, i32
  }
}

</mosaic_0001>

<llo_original>
// kernel: tpu_custom_call.1
$region0: #{tpu_custom_call.1}
  #allocation0 [shape = 'u32[]', space=smem, size = 0x4, offset = 0x4, fixed_abs, tag = 'smem constant byte address 0x4 - core index']
  #allocation1 [shape = 'u32[144,128]{1,0:T(1,128)}', space=vmem, size = 0x12000, scoped, tag = 'internal scratch']
  #allocation2 [shape = 's32[1]{0}', space=sflag, size = 0x4, scoped, tag = 'scoped memory for tpu_custom_call.1']
  #allocation3 [shape = 'u8[4096]{0}', space=smem, size = 0x1000, scoped, tag = 'prefetched SMEM operand 0']
  #allocation4 [shape = 'u8[512]{0}', space=smem, size = 0x200, scoped, tag = 'prefetched SMEM operand 1']
  %s0 = inlined_call_operand.vmem [shape: f32[5,4], index: 0, kind: input, shape index: {}]
  %s1 = inlined_call_operand.vmem [shape: f32[5], index: 1, kind: input, shape index: {}]
  %s2 = inlined_call_operand.hbm [shape: f32[1,2,64,64], index: 2, kind: input, shape index: {}]
  %s3 = inlined_call_operand.vmem [shape: f32[1,5,66,66], index: 3, kind: output, shape index: {}]
  %s4 = sld [smem:[#allocation0]]
  $region18: #{tpu_custom_call.1} parent=0
    _
  %s6 = ssub.s32 1, %s4
  %s7 = scalar_select 0, %s6, %s4
  %s8 = sshll.u32 %s0, 4
  %s9 = int_to_ptr.vmem [resolvable:$true] %s8
  %11 = dma.vmem_to_smem %s9, 128, [#allocation3], [#allocation2]
  %s12 = sshll.u32 %s1, 4
  %s13 = int_to_ptr.vmem [resolvable:$true] %s12
  %15 = dma.vmem_to_smem %s13, 16, [#allocation4], [#allocation2]
  %16 = dma.done [#allocation2], 144
  %17 = sfence
  $region1: #{tpu_custom_call.1} parent=0
    #allocation5 [shape = 'u8[65536]{0}', space=vmem, size = 0x10000, scoped, tag = 'input window, operand 2, single buffered']
    #allocation6 [shape = 's32[1]{0}', space=sflag, size = 0x4, scoped, tag = 'scoped memory for tpu_custom_call.1']
    %18 = vsyncpa [#allocation6], 0
    // Predicated region
    $region2: #{tpu_custom_call.1} parent=1 // pred_check
      _
    $region3: #{tpu_custom_call.1} parent=1 // pred_check_branch
      %20 = sbr.rel (0) target = $region5
    $region4: #{tpu_custom_call.1} parent=1 // pred_region
      %s22 = ssub.s32 2048, 2048
      %23 = vsyncadd [#allocation6], %s22
      %s24 = sshll.u32 [#allocation5], 4
      %s25 = int_to_ptr.vmem [resolvable:$true] %s24
      %30 = dma.hbm_to_vmem [thread:$0]  %s2, 2048, %s25, [#allocation6], 128, 128, 8
    $region5: #{tpu_custom_call.1} parent=1 // pred_fallthru
      _
    // Predicated region
    $region6: #{tpu_custom_call.1} parent=1 // pred_check
      _
    $region7: #{tpu_custom_call.1} parent=1 // pred_check_branch
      %32 = sbr.rel (0) target = $region9
    $region8: #{tpu_custom_call.1} parent=1 // pred_region
      %33 = dma.done [#allocation6], 2048
    $region9: #{tpu_custom_call.1} parent=1 // pred_fallthru
      _
    %v34 = vld [vmem:[#allocation5] sm:$0xff]
    %v35 = vld [vmem:[#allocation5 + $0x8] sm:$0xff]
    %v36 = vld [vmem:[#allocation5 + $0x10] sm:$0xff]
    %v37 = vld [vmem:[#allocation5 + $0x18] sm:$0xff]
    %v38 = vld [vmem:[#allocation5 + $0x20] sm:$0xff]
    %v39 = vld [vmem:[#allocation5 + $0x28] sm:$0xff]
    %v40 = vld [vmem:[#allocation5 + $0x30] sm:$0xff]
    %v41 = vld [vmem:[#allocation5 + $0x38] sm:$0xff]
    %v42 = vld [vmem:[#allocation5 + $0x40] sm:$0xff]
    %v43 = vld [vmem:[#allocation5 + $0x48] sm:$0xff]
    %v44 = vld [vmem:[#allocation5 + $0x50] sm:$0xff]
    %v45 = vld [vmem:[#allocation5 + $0x58] sm:$0xff]
    %v46 = vld [vmem:[#allocation5 + $0x60] sm:$0xff]
    %v47 = vld [vmem:[#allocation5 + $0x68] sm:$0xff]
    %v48 = vld [vmem:[#allocation5 + $0x70] sm:$0xff]
    %v49 = vld [vmem:[#allocation5 + $0x78] sm:$0xff]
    %50 = vxpose.xlu0.b32.start [1/16] %v34, 128
    %51 = vxpose.xlu0.b32.cont [2/16] %v35, 128
    %52 = vxpose.xlu0.b32.cont [3/16] %v36, 128
    %53 = vxpose.xlu0.b32.cont [4/16] %v37, 128
    %54 = vxpose.xlu0.b32.cont [5/16] %v38, 128
    %55 = vxpose.xlu0.b32.cont [6/16] %v39, 128
    %56 = vxpose.xlu0.b32.cont [7/16] %v40, 128
    %57 = vxpose.xlu0.b32.cont [8/16] %v41, 128
    %58 = vxpose.xlu0.b32.cont [9/16] 0.0, 128
    %59 = vxpose.xlu0.b32.cont [10/16] 0.0, 128
    %60 = vxpose.xlu0.b32.cont [11/16] 0.0, 128
    %61 = vxpose.xlu0.b32.cont [12/16] 0.0, 128
    %62 = vxpose.xlu0.b32.cont [13/16] 0.0, 128
    %63 = vxpose.xlu0.b32.cont [14/16] 0.0, 128
    %64 = vxpose.xlu0.b32.cont [15/16] 0.0, 128
    %65 = vxpose.xlu0.b32.end [16/16] 0.0, 128
    %v66 = vpop.trf.xlu0
    %v67 = vpop.trf.xlu0
    %v68 = vpop.trf.xlu0
    %v69 = vpop.trf.xlu0
    %v70 = vpop.trf.xlu0
    %v71 = vpop.trf.xlu0
    %v72 = vpop.trf.xlu0
    %v73 = vpop.trf.xlu0
    %v74 = vpop.trf.xlu0
    %v75 = vpop.trf.xlu0
    %v76 = vpop.trf.xlu0
    %v77 = vpop.trf.xlu0
    %v78 = vpop.trf.xlu0
    %v79 = vpop.trf.xlu0
    %v80 = vpop.trf.xlu0
    %v81 = vpop.trf.xlu0
    %82 = vxpose.xlu0.b32.start [1/16] %v42, 128
    %83 = vxpose.xlu0.b32.cont [2/16] %v43, 128
    %84 = vxpose.xlu0.b32.cont [3/16] %v44, 128
    %85 = vxpose.xlu0.b32.cont [4/16] %v45, 128
    %86 = vxpose.xlu0.b32.cont [5/16] %v46, 128
    %87 = vxpose.xlu0.b32.cont [6/16] %v47, 128
    %88 = vxpose.xlu0.b32.cont [7/16] %v48, 128
    %89 = vxpose.xlu0.b32.cont [8/16] %v49, 128
    %90 = vxpose.xlu0.b32.cont [9/16] 0.0, 128
    %91 = vxpose.xlu0.b32.cont [10/16] 0.0, 128
    %92 = vxpose.xlu0.b32.cont [11/16] 0.0, 128
    %93 = vxpose.xlu0.b32.cont [12/16] 0.0, 128
    %94 = vxpose.xlu0.b32.cont [13/16] 0.0, 128
    %95 = vxpose.xlu0.b32.cont [14/16] 0.0, 128
    %96 = vxpose.xlu0.b32.cont [15/16] 0.0, 128
    %97 = vxpose.xlu0.b32.end [16/16] 0.0, 128
    %v98 = vpop.trf.xlu0
    %v99 = vpop.trf.xlu0
    %v100 = vpop.trf.xlu0
    %v101 = vpop.trf.xlu0
    %v102 = vpop.trf.xlu0
    %v103 = vpop.trf.xlu0
    %v104 = vpop.trf.xlu0
    %v105 = vpop.trf.xlu0
    %v106 = vpop.trf.xlu0
    %v107 = vpop.trf.xlu0
    %v108 = vpop.trf.xlu0
    %v109 = vpop.trf.xlu0
    %v110 = vpop.trf.xlu0
    %v111 = vpop.trf.xlu0
    %v112 = vpop.trf.xlu0
    %v113 = vpop.trf.xlu0
    %s114 = sld [smem:[#allocation4]]
    %v115 = vstv %s114
    %s116 = sld [smem:[#allocation3]]
    %v117 = vstv %s116
    %v118 = vmul.f32 %v117, %v34
    %v119 = vmul.f32 %v117, %v35
    %v120 = vmul.f32 %v117, %v36
    %v121 = vmul.f32 %v117, %v37
    %v122 = vmul.f32 %v117, %v38
    %v123 = vmul.f32 %v117, %v39
    %v124 = vmul.f32 %v117, %v40
    %v125 = vmul.f32 %v117, %v41
    %v126 = vadd.f32 %v115, %v118
    %v127 = vadd.f32 %v115, %v119
    %v128 = vadd.f32 %v115, %v120
    %v129 = vadd.f32 %v115, %v121
    %v130 = vadd.f32 %v115, %v122
    %v131 = vadd.f32 %v115, %v123
    %v132 = vadd.f32 %v115, %v124
    %v133 = vadd.f32 %v115, %v125
    %s134 = sld [smem:[#allocation3 + $0x2]]
    %v135 = vstv %s134
    %v136 = vmul.f32 %v135, %v66
    %v137 = vmul.f32 %v135, %v67
    %v138 = vmul.f32 %v135, %v68
    %v139 = vmul.f32 %v135, %v69
    %v140 = vmul.f32 %v135, %v70
    %v141 = vmul.f32 %v135, %v71
    %v142 = vmul.f32 %v135, %v72
    %v143 = vmul.f32 %v135, %v73
    %v144 = vadd.f32 %v126, %v136
    %v145 = vadd.f32 %v127, %v137
    %v146 = vadd.f32 %v128, %v138
    %v147 = vadd.f32 %v129, %v139
    %v148 = vadd.f32 %v130, %v140
    %v149 = vadd.f32 %v131, %v141
    %v150 = vadd.f32 %v132, %v142
    %v151 = vadd.f32 %v133, %v143
    %s152 = sld [smem:[#allocation3 + $0x1]]
    %v153 = vstv %s152
    %v154 = vmul.f32 %v153, %v42
    %v155 = vmul.f32 %v153, %v43
    %v156 = vmul.f32 %v153, %v44
    %v157 = vmul.f32 %v153, %v45
    %v158 = vmul.f32 %v153, %v46
    %v159 = vmul.f32 %v153, %v47
    %v160 = vmul.f32 %v153, %v48
    %v161 = vmul.f32 %v153, %v49
    %v162 = vadd.f32 %v144, %v154
    %v163 = vadd.f32 %v145, %v155
    %v164 = vadd.f32 %v146, %v156
    %v165 = vadd.f32 %v147, %v157
    %v166 = vadd.f32 %v148, %v158
    %v167 = vadd.f32 %v149, %v159
    %v168 = vadd.f32 %v150, %v160
    %v169 = vadd.f32 %v151, %v161
    %s170 = sld [smem:[#allocation3 + $0x3]]
    %v171 = vstv %s170
    %v172 = vmul.f32 %v171, %v98
    %v173 = vmul.f32 %v171, %v99
    %v174 = vmul.f32 %v171, %v100
    %v175 = vmul.f32 %v171, %v101
    %v176 = vmul.f32 %v171, %v102
    %v177 = vmul.f32 %v171, %v103
    %v178 = vmul.f32 %v171, %v104
    %v179 = vmul.f32 %v171, %v105
    %v180 = vadd.f32 %v162, %v172
    %v181 = vadd.f32 %v163, %v173
    %v182 = vadd.f32 %v164, %v174
    %v183 = vadd.f32 %v165, %v175
    %v184 = vadd.f32 %v166, %v176
    %v185 = vadd.f32 %v167, %v177
    %v186 = vadd.f32 %v168, %v178
    %v187 = vadd.f32 %v169, %v179
    %vm188 = vcmask 539648
    %189 = vst.msk [vmem:[%s3] sm:$0xff] %vm188, %v115
    %190 = vst.msk [vmem:[%s3 + $0x8] sm:$0xff] %vm188, %v115
    %191 = vst.msk [vmem:[%s3 + $0x10] sm:$0xff] %vm188, %v115
    %192 = vst.msk [vmem:[%s3 + $0x18] sm:$0xff] %vm188, %v115
    %193 = vst.msk [vmem:[%s3 + $0x20] sm:$0xff] %vm188, %v115
    %194 = vst.msk [vmem:[%s3 + $0x28] sm:$0xff] %vm188, %v115
    %195 = vst.msk [vmem:[%s3 + $0x30] sm:$0xff] %vm188, %v115
    %196 = vst.msk [vmem:[%s3 + $0x38] sm:$0xff] %vm188, %v115
    %vm197 = vcmask 533504
    %198 = vst.msk [vmem:[%s3 + $0x40] sm:$0x3] %vm197, %v115
    %207 = vrot.lane.b32.xlu0 %v180, 1
    %v208 = vpop.permute.xlu0 %207
    %209 = vrot.lane.b32.xlu0 %v181, 1
    %v210 = vpop.permute.xlu0 %209
    %211 = vrot.lane.b32.xlu0 %v182, 1
    %v212 = vpop.permute.xlu0 %211
    %213 = vrot.lane.b32.xlu0 %v183, 1
    %v214 = vpop.permute.xlu0 %213
    %215 = vrot.lane.b32.xlu0 %v184, 1
    %v216 = vpop.permute.xlu0 %215
    %217 = vrot.lane.b32.xlu0 %v185, 1
    %v218 = vpop.permute.xlu0 %217
    %219 = vrot.lane.b32.xlu0 %v186, 1
    %v220 = vpop.permute.xlu0 %219
    %221 = vrot.lane.b32.xlu0 %v187, 1
    %v222 = vpop.permute.xlu0 %221
    %vm231 = vcmask 531464
    %232 = vst.msk [vmem:[%s3 + $0x1] sm:$0xff] %vm231, %v208
    %233 = vst.msk [vmem:[%s3 + $0x9] sm:$0xff] %vm231, %v210
    %234 = vst.msk [vmem:[%s3 + $0x11] sm:$0xff] %vm231, %v212
    %235 = vst.msk [vmem:[%s3 + $0x19] sm:$0xff] %vm231, %v214
    %236 = vst.msk [vmem:[%s3 + $0x21] sm:$0xff] %vm231, %v216
    %237 = vst.msk [vmem:[%s3 + $0x29] sm:$0xff] %vm231, %v218
    %238 = vst.msk [vmem:[%s3 + $0x31] sm:$0xff] %vm231, %v220
    %239 = vst.msk [vmem:[%s3 + $0x39] sm:$0xff] %vm231, %v222
    %s240 = sld [smem:[#allocation4 + $0x1]]
    %v241 = vstv %s240
    %s242 = sld [smem:[#allocation3 + $0x80]]
    %v243 = vstv %s242
    %v244 = vmul.f32 %v243, %v34
    %v245 = vmul.f32 %v243, %v35
    %v246 = vmul.f32 %v243, %v36
    %v247 = vmul.f32 %v243, %v37
    %v248 = vmul.f32 %v243, %v38
    %v249 = vmul.f32 %v243, %v39
    %v250 = vmul.f32 %v243, %v40
    %v251 = vmul.f32 %v243, %v41
    %v252 = vadd.f32 %v241, %v244
    %v253 = vadd.f32 %v241, %v245
    %v254 = vadd.f32 %v241, %v246
    %v255 = vadd.f32 %v241, %v247
    %v256 = vadd.f32 %v241, %v248
    %v257 = vadd.f32 %v241, %v249
    %v258 = vadd.f32 %v241, %v250
    %v259 = vadd.f32 %v241, %v251
    %s260 = sld [smem:[#allocation3 + $0x82]]
    %v261 = vstv %s260
    %v262 = vmul.f32 %v261, %v66
    %v263 = vmul.f32 %v261, %v67
    %v264 = vmul.f32 %v261, %v68
    %v265 = vmul.f32 %v261, %v69
    %v266 = vmul.f32 %v261, %v70
    %v267 = vmul.f32 %v261, %v71
    %v268 = vmul.f32 %v261, %v72
    %v269 = vmul.f32 %v261, %v73
    %v270 = vadd.f32 %v252, %v262
    %v271 = vadd.f32 %v253, %v263
    %v272 = vadd.f32 %v254, %v264
    %v273 = vadd.f32 %v255, %v265
    %v274 = vadd.f32 %v256, %v266
    %v275 = vadd.f32 %v257, %v267
    %v276 = vadd.f32 %v258, %v268
    %v277 = vadd.f32 %v259, %v269
    %s278 = sld [smem:[#allocation3 + $0x81]]
    %v279 = vstv %s278
    %v280 = vmul.f32 %v279, %v42
    %v281 = vmul.f32 %v279, %v43
    %v282 = vmul.f32 %v279, %v44
    %v283 = vmul.f32 %v279, %v45
    %v284 = vmul.f32 %v279, %v46
    %v285 = vmul.f32 %v279, %v47
    %v286 = vmul.f32 %v279, %v48
    %v287 = vmul.f32 %v279, %v49
    %v288 = vadd.f32 %v270, %v280
    %v289 = vadd.f32 %v271, %v281
    %v290 = vadd.f32 %v272, %v282
    %v291 = vadd.f32 %v273, %v283
    %v292 = vadd.f32 %v274, %v284
    %v293 = vadd.f32 %v275, %v285
    %v294 = vadd.f32 %v276, %v286
    %v295 = vadd.f32 %v277, %v287
    %s296 = sld [smem:[#allocation3 + $0x83]]
    %v297 = vstv %s296
    %v298 = vmul.f32 %v297, %v98
    %v299 = vmul.f32 %v297, %v99
    %v300 = vmul.f32 %v297, %v100
    %v301 = vmul.f32 %v297, %v101
    %v302 = vmul.f32 %v297, %v102
    %v303 = vmul.f32 %v297, %v103
    %v304 = vmul.f32 %v297, %v104
    %v305 = vmul.f32 %v297, %v105
    %v306 = vadd.f32 %v288, %v298
    %v307 = vadd.f32 %v289, %v299
    %v308 = vadd.f32 %v290, %v300
    %v309 = vadd.f32 %v291, %v301
    %v310 = vadd.f32 %v292, %v302
    %v311 = vadd.f32 %v293, %v303
    %v312 = vadd.f32 %v294, %v304
    %v313 = vadd.f32 %v295, %v305
    %s314 = scalar_lea.vmem %s3, 72
    %315 = vst.msk [vmem:[%s314] sm:$0xff] %vm188, %v241
    %316 = vst.msk [vmem:[%s314 + $0x8] sm:$0xff] %vm188, %v241
    %317 = vst.msk [vmem:[%s314 + $0x10] sm:$0xff] %vm188, %v241
    %318 = vst.msk [vmem:[%s314 + $0x18] sm:$0xff] %vm188, %v241
    %319 = vst.msk [vmem:[%s314 + $0x20] sm:$0xff] %vm188, %v241
    %320 = vst.msk [vmem:[%s314 + $0x28] sm:$0xff] %vm188, %v241
    %321 = vst.msk [vmem:[%s314 + $0x30] sm:$0xff] %vm188, %v241
    %322 = vst.msk [vmem:[%s314 + $0x38] sm:$0xff] %vm188, %v241
    %323 = vst.msk [vmem:[%s314 + $0x40] sm:$0x3] %vm197, %v241
    %332 = vrot.lane.b32.xlu0 %v306, 1
    %v333 = vpop.permute.xlu0 %332
    %334 = vrot.lane.b32.xlu0 %v307, 1
    %v335 = vpop.permute.xlu0 %334
    %336 = vrot.lane.b32.xlu0 %v308, 1
    %v337 = vpop.permute.xlu0 %336
    %338 = vrot.lane.b32.xlu0 %v309, 1
    %v339 = vpop.permute.xlu0 %338
    %340 = vrot.lane.b32.xlu0 %v310, 1
    %v341 = vpop.permute.xlu0 %340
    %342 = vrot.lane.b32.xlu0 %v311, 1
    %v343 = vpop.permute.xlu0 %342
    %344 = vrot.lane.b32.xlu0 %v312, 1
    %v345 = vpop.permute.xlu0 %344
    %346 = vrot.lane.b32.xlu0 %v313, 1
    %v347 = vpop.permute.xlu0 %346
    %356 = vst.msk [vmem:[%s314 + $0x1] sm:$0xff] %vm231, %v333
    %357 = vst.msk [vmem:[%s314 + $0x9] sm:$0xff] %vm231, %v335
    %358 = vst.msk [vmem:[%s314 + $0x11] sm:$0xff] %vm231, %v337
    %359 = vst.msk [vmem:[%s314 + $0x19] sm:$0xff] %vm231, %v339
    %360 = vst.msk [vmem:[%s314 + $0x21] sm:$0xff] %vm231, %v341
    %361 = vst.msk [vmem:[%s314 + $0x29] sm:$0xff] %vm231, %v343
    %362 = vst.msk [vmem:[%s314 + $0x31] sm:$0xff] %vm231, %v345
    %363 = vst.msk [vmem:[%s314 + $0x39] sm:$0xff] %vm231, %v347
    %s364 = sld [smem:[#allocation4 + $0x2]]
    %v365 = vstv %s364
    %s366 = sld [smem:[#allocation3 + $0x100]]
    %v367 = vstv %s366
    %v368 = vmul.f32 %v367, %v34
    %v369 = vmul.f32 %v367, %v35
    %v370 = vmul.f32 %v367, %v36
    %v371 = vmul.f32 %v367, %v37
    %v372 = vmul.f32 %v367, %v38
    %v373 = vmul.f32 %v367, %v39
    %v374 = vmul.f32 %v367, %v40
    %v375 = vmul.f32 %v367, %v41
    %v376 = vadd.f32 %v365, %v368
    %v377 = vadd.f32 %v365, %v369
    %v378 = vadd.f32 %v365, %v370
    %v379 = vadd.f32 %v365, %v371
    %v380 = vadd.f32 %v365, %v372
    %v381 = vadd.f32 %v365, %v373
    %v382 = vadd.f32 %v365, %v374
    %v383 = vadd.f32 %v365, %v375
    %s384 = sld [smem:[#allocation3 + $0x102]]
    %v385 = vstv %s384
    %v386 = vmul.f32 %v385, %v66
    %v387 = vmul.f32 %v385, %v67
    %v388 = vmul.f32 %v385, %v68
    %v389 = vmul.f32 %v385, %v69
    %v390 = vmul.f32 %v385, %v70
    %v391 = vmul.f32 %v385, %v71
    %v392 = vmul.f32 %v385, %v72
    %v393 = vmul.f32 %v385, %v73
    %v394 = vadd.f32 %v376, %v386
    %v395 = vadd.f32 %v377, %v387
    %v396 = vadd.f32 %v378, %v388
    %v397 = vadd.f32 %v379, %v389
    %v398 = vadd.f32 %v380, %v390
    %v399 = vadd.f32 %v381, %v391
    %v400 = vadd.f32 %v382, %v392
    %v401 = vadd.f32 %v383, %v393
    %s402 = sld [smem:[#allocation3 + $0x101]]
    %v403 = vstv %s402
    %v404 = vmul.f32 %v403, %v42
    %v405 = vmul.f32 %v403, %v43
    %v406 = vmul.f32 %v403, %v44
    %v407 = vmul.f32 %v403, %v45
    %v408 = vmul.f32 %v403, %v46
    %v409 = vmul.f32 %v403, %v47
    %v410 = vmul.f32 %v403, %v48
    %v411 = vmul.f32 %v403, %v49
    %v412 = vadd.f32 %v394, %v404
    %v413 = vadd.f32 %v395, %v405
    %v414 = vadd.f32 %v396, %v406
    %v415 = vadd.f32 %v397, %v407
    %v416 = vadd.f32 %v398, %v408
    %v417 = vadd.f32 %v399, %v409
    %v418 = vadd.f32 %v400, %v410
    %v419 = vadd.f32 %v401, %v411
    %s420 = sld [smem:[#allocation3 + $0x103]]
    %v421 = vstv %s420
    %v422 = vmul.f32 %v421, %v98
    %v423 = vmul.f32 %v421, %v99
    %v424 = vmul.f32 %v421, %v100
    %v425 = vmul.f32 %v421, %v101
    %v426 = vmul.f32 %v421, %v102
    %v427 = vmul.f32 %v421, %v103
    %v428 = vmul.f32 %v421, %v104
    %v429 = vmul.f32 %v421, %v105
    %v430 = vadd.f32 %v412, %v422
    %v431 = vadd.f32 %v413, %v423
    %v432 = vadd.f32 %v414, %v424
    %v433 = vadd.f32 %v415, %v425
    %v434 = vadd.f32 %v416, %v426
    %v435 = vadd.f32 %v417, %v427
    %v436 = vadd.f32 %v418, %v428
    %v437 = vadd.f32 %v419, %v429
    %s438 = scalar_lea.vmem %s3, 144
    %439 = vst.msk [vmem:[%s438] sm:$0xff] %vm188, %v365
    %440 = vst.msk [vmem:[%s438 + $0x8] sm:$0xff] %vm188, %v365
    %441 = vst.msk [vmem:[%s438 + $0x10] sm:$0xff] %vm188, %v365
    %442 = vst.msk [vmem:[%s438 + $0x18] sm:$0xff] %vm188, %v365
    %443 = vst.msk [vmem:[%s438 + $0x20] sm:$0xff] %vm188, %v365
    %444 = vst.msk [vmem:[%s438 + $0x28] sm:$0xff] %vm188, %v365
    %445 = vst.msk [vmem:[%s438 + $0x30] sm:$0xff] %vm188, %v365
    %446 = vst.msk [vmem:[%s438 + $0x38] sm:$0xff] %vm188, %v365
    %447 = vst.msk [vmem:[%s438 + $0x40] sm:$0x3] %vm197, %v365
    %456 = vrot.lane.b32.xlu0 %v430, 1
    %v457 = vpop.permute.xlu0 %456
    %458 = vrot.lane.b32.xlu0 %v431, 1
    %v459 = vpop.permute.xlu0 %458
    %460 = vrot.lane.b32.xlu0 %v432, 1
    %v461 = vpop.permute.xlu0 %460
    %462 = vrot.lane.b32.xlu0 %v433, 1
    %v463 = vpop.permute.xlu0 %462
    %464 = vrot.lane.b32.xlu0 %v434, 1
    %v465 = vpop.permute.xlu0 %464
    %466 = vrot.lane.b32.xlu0 %v435, 1
    %v467 = vpop.permute.xlu0 %466
    %468 = vrot.lane.b32.xlu0 %v436, 1
    %v469 = vpop.permute.xlu0 %468
    %470 = vrot.lane.b32.xlu0 %v437, 1
    %v471 = vpop.permute.xlu0 %470
    %480 = vst.msk [vmem:[%s438 + $0x1] sm:$0xff] %vm231, %v457
    %481 = vst.msk [vmem:[%s438 + $0x9] sm:$0xff] %vm231, %v459
    %482 = vst.msk [vmem:[%s438 + $0x11] sm:$0xff] %vm231, %v461
    %483 = vst.msk [vmem:[%s438 + $0x19] sm:$0xff] %vm231, %v463
    %484 = vst.msk [vmem:[%s438 + $0x21] sm:$0xff] %vm231, %v465
    %485 = vst.msk [vmem:[%s438 + $0x29] sm:$0xff] %vm231, %v467
    %486 = vst.msk [vmem:[%s438 + $0x31] sm:$0xff] %vm231, %v469
    %487 = vst.msk [vmem:[%s438 + $0x39] sm:$0xff] %vm231, %v471
    %s488 = sld [smem:[#allocation4 + $0x3]]
    %v489 = vstv %s488
    %s490 = sld [smem:[#allocation3 + $0x180]]
    %v491 = vstv %s490
    %v492 = vmul.f32 %v491, %v34
    %v493 = vmul.f32 %v491, %v35
    %v494 = vmul.f32 %v491, %v36
    %v495 = vmul.f32 %v491, %v37
    %v496 = vmul.f32 %v491, %v38
    %v497 = vmul.f32 %v491, %v39
    %v498 = vmul.f32 %v491, %v40
    %v499 = vmul.f32 %v491, %v41
    %v500 = vadd.f32 %v489, %v492
    %v501 = vadd.f32 %v489, %v493
    %v502 = vadd.f32 %v489, %v494
    %v503 = vadd.f32 %v489, %v495
    %v504 = vadd.f32 %v489, %v496
    %v505 = vadd.f32 %v489, %v497
    %v506 = vadd.f32 %v489, %v498
    %v507 = vadd.f32 %v489, %v499
    %s508 = sld [smem:[#allocation3 + $0x182]]
    %v509 = vstv %s508
    %v510 = vmul.f32 %v509, %v66
    %v511 = vmul.f32 %v509, %v67
    %v512 = vmul.f32 %v509, %v68
    %v513 = vmul.f32 %v509, %v69
    %v514 = vmul.f32 %v509, %v70
    %v515 = vmul.f32 %v509, %v71
    %v516 = vmul.f32 %v509, %v72
    %v517 = vmul.f32 %v509, %v73
    %v518 = vadd.f32 %v500, %v510
    %v519 = vadd.f32 %v501, %v511
    %v520 = vadd.f32 %v502, %v512
    %v521 = vadd.f32 %v503, %v513
    %v522 = vadd.f32 %v504, %v514
    %v523 = vadd.f32 %v505, %v515
    %v524 = vadd.f32 %v506, %v516
    %v525 = vadd.f32 %v507, %v517
    %s526 = sld [smem:[#allocation3 + $0x181]]
    %v527 = vstv %s526
    %v528 = vmul.f32 %v527, %v42
    %v529 = vmul.f32 %v527, %v43
    %v530 = vmul.f32 %v527, %v44
    %v531 = vmul.f32 %v527, %v45
    %v532 = vmul.f32 %v527, %v46
    %v533 = vmul.f32 %v527, %v47
    %v534 = vmul.f32 %v527, %v48
    %v535 = vmul.f32 %v527, %v49
    %v536 = vadd.f32 %v518, %v528
    %v537 = vadd.f32 %v519, %v529
    %v538 = vadd.f32 %v520, %v530
    %v539 = vadd.f32 %v521, %v531
    %v540 = vadd.f32 %v522, %v532
    %v541 = vadd.f32 %v523, %v533
    %v542 = vadd.f32 %v524, %v534
    %v543 = vadd.f32 %v525, %v535
    %s544 = sld [smem:[#allocation3 + $0x183]]
    %v545 = vstv %s544
    %v546 = vmul.f32 %v545, %v98
    %v547 = vmul.f32 %v545, %v99
    %v548 = vmul.f32 %v545, %v100
    %v549 = vmul.f32 %v545, %v101
    %v550 = vmul.f32 %v545, %v102
    %v551 = vmul.f32 %v545, %v103
    %v552 = vmul.f32 %v545, %v104
    %v553 = vmul.f32 %v545, %v105
    %v554 = vadd.f32 %v536, %v546
    %v555 = vadd.f32 %v537, %v547
    %v556 = vadd.f32 %v538, %v548
    %v557 = vadd.f32 %v539, %v549
    %v558 = vadd.f32 %v540, %v550
    %v559 = vadd.f32 %v541, %v551
    %v560 = vadd.f32 %v542, %v552
    %v561 = vadd.f32 %v543, %v553
    %s562 = scalar_lea.vmem %s3, 216
    %563 = vst.msk [vmem:[%s562] sm:$0xff] %vm188, %v489
    %564 = vst.msk [vmem:[%s562 + $0x8] sm:$0xff] %vm188, %v489
    %565 = vst.msk [vmem:[%s562 + $0x10] sm:$0xff] %vm188, %v489
    %566 = vst.msk [vmem:[%s562 + $0x18] sm:$0xff] %vm188, %v489
    %567 = vst.msk [vmem:[%s562 + $0x20] sm:$0xff] %vm188, %v489
    %568 = vst.msk [vmem:[%s562 + $0x28] sm:$0xff] %vm188, %v489
    %569 = vst.msk [vmem:[%s562 + $0x30] sm:$0xff] %vm188, %v489
    %570 = vst.msk [vmem:[%s562 + $0x38] sm:$0xff] %vm188, %v489
    %571 = vst.msk [vmem:[%s562 + $0x40] sm:$0x3] %vm197, %v489
    %580 = vrot.lane.b32.xlu0 %v554, 1
    %v581 = vpop.permute.xlu0 %580
    %582 = vrot.lane.b32.xlu0 %v555, 1
    %v583 = vpop.permute.xlu0 %582
    %584 = vrot.lane.b32.xlu0 %v556, 1
    %v585 = vpop.permute.xlu0 %584
    %586 = vrot.lane.b32.xlu0 %v557, 1
    %v587 = vpop.permute.xlu0 %586
    %588 = vrot.lane.b32.xlu0 %v558, 1
    %v589 = vpop.permute.xlu0 %588
    %590 = vrot.lane.b32.xlu0 %v559, 1
    %v591 = vpop.permute.xlu0 %590
    %592 = vrot.lane.b32.xlu0 %v560, 1
    %v593 = vpop.permute.xlu0 %592
    %594 = vrot.lane.b32.xlu0 %v561, 1
    %v595 = vpop.permute.xlu0 %594
    %604 = vst.msk [vmem:[%s562 + $0x1] sm:$0xff] %vm231, %v581
    %605 = vst.msk [vmem:[%s562 + $0x9] sm:$0xff] %vm231, %v583
    %606 = vst.msk [vmem:[%s562 + $0x11] sm:$0xff] %vm231, %v585
    %607 = vst.msk [vmem:[%s562 + $0x19] sm:$0xff] %vm231, %v587
    %608 = vst.msk [vmem:[%s562 + $0x21] sm:$0xff] %vm231, %v589
    %609 = vst.msk [vmem:[%s562 + $0x29] sm:$0xff] %vm231, %v591
    %610 = vst.msk [vmem:[%s562 + $0x31] sm:$0xff] %vm231, %v593
    %611 = vst.msk [vmem:[%s562 + $0x39] sm:$0xff] %vm231, %v595
    %s612 = sld [smem:[#allocation4 + $0x4]]
    %v613 = vstv %s612
    %s614 = sld [smem:[#allocation3 + $0x200]]
    %v615 = vstv %s614
    %v616 = vmul.f32 %v615, %v34
    %v617 = vmul.f32 %v615, %v35
    %v618 = vmul.f32 %v615, %v36
    %v619 = vmul.f32 %v615, %v37
    %v620 = vmul.f32 %v615, %v38
    %v621 = vmul.f32 %v615, %v39
    %v622 = vmul.f32 %v615, %v40
    %v623 = vmul.f32 %v615, %v41
    %v624 = vadd.f32 %v613, %v616
    %v625 = vadd.f32 %v613, %v617
    %v626 = vadd.f32 %v613, %v618
    %v627 = vadd.f32 %v613, %v619
    %v628 = vadd.f32 %v613, %v620
    %v629 = vadd.f32 %v613, %v621
    %v630 = vadd.f32 %v613, %v622
    %v631 = vadd.f32 %v613, %v623
    %s632 = sld [smem:[#allocation3 + $0x202]]
    %v633 = vstv %s632
    %v634 = vmul.f32 %v633, %v66
    %v635 = vmul.f32 %v633, %v67
    %v636 = vmul.f32 %v633, %v68
    %v637 = vmul.f32 %v633, %v69
    %v638 = vmul.f32 %v633, %v70
    %v639 = vmul.f32 %v633, %v71
    %v640 = vmul.f32 %v633, %v72
    %v641 = vmul.f32 %v633, %v73
    %v642 = vadd.f32 %v624, %v634
    %v643 = vadd.f32 %v625, %v635
    %v644 = vadd.f32 %v626, %v636
    %v645 = vadd.f32 %v627, %v637
    %v646 = vadd.f32 %v628, %v638
    %v647 = vadd.f32 %v629, %v639
    %v648 = vadd.f32 %v630, %v640
    %v649 = vadd.f32 %v631, %v641
    %s650 = sld [smem:[#allocation3 + $0x201]]
    %v651 = vstv %s650
    %v652 = vmul.f32 %v651, %v42
    %v653 = vmul.f32 %v651, %v43
    %v654 = vmul.f32 %v651, %v44
    %v655 = vmul.f32 %v651, %v45
    %v656 = vmul.f32 %v651, %v46
    %v657 = vmul.f32 %v651, %v47
    %v658 = vmul.f32 %v651, %v48
    %v659 = vmul.f32 %v651, %v49
    %v660 = vadd.f32 %v642, %v652
    %v661 = vadd.f32 %v643, %v653
    %v662 = vadd.f32 %v644, %v654
    %v663 = vadd.f32 %v645, %v655
    %v664 = vadd.f32 %v646, %v656
    %v665 = vadd.f32 %v647, %v657
    %v666 = vadd.f32 %v648, %v658
    %v667 = vadd.f32 %v649, %v659
    %s668 = sld [smem:[#allocation3 + $0x203]]
    %v669 = vstv %s668
    %v670 = vmul.f32 %v669, %v98
    %v671 = vmul.f32 %v669, %v99
    %v672 = vmul.f32 %v669, %v100
    %v673 = vmul.f32 %v669, %v101
    %v674 = vmul.f32 %v669, %v102
    %v675 = vmul.f32 %v669, %v103
    %v676 = vmul.f32 %v669, %v104
    %v677 = vmul.f32 %v669, %v105
    %v678 = vadd.f32 %v660, %v670
    %v679 = vadd.f32 %v661, %v671
    %v680 = vadd.f32 %v662, %v672
    %v681 = vadd.f32 %v663, %v673
    %v682 = vadd.f32 %v664, %v674
    %v683 = vadd.f32 %v665, %v675
    %v684 = vadd.f32 %v666, %v676
    %v685 = vadd.f32 %v667, %v677
    %s686 = scalar_lea.vmem %s3, 288
    %687 = vst.msk [vmem:[%s686] sm:$0xff] %vm188, %v613
    %688 = vst.msk [vmem:[%s686 + $0x8] sm:$0xff] %vm188, %v613
    %689 = vst.msk [vmem:[%s686 + $0x10] sm:$0xff] %vm188, %v613
    %690 = vst.msk [vmem:[%s686 + $0x18] sm:$0xff] %vm188, %v613
    %691 = vst.msk [vmem:[%s686 + $0x20] sm:$0xff] %vm188, %v613
    %692 = vst.msk [vmem:[%s686 + $0x28] sm:$0xff] %vm188, %v613
    %693 = vst.msk [vmem:[%s686 + $0x30] sm:$0xff] %vm188, %v613
    %694 = vst.msk [vmem:[%s686 + $0x38] sm:$0xff] %vm188, %v613
    %695 = vst.msk [vmem:[%s686 + $0x40] sm:$0x3] %vm197, %v613
    %704 = vrot.lane.b32.xlu0 %v678, 1
    %v705 = vpop.permute.xlu0 %704
    %706 = vrot.lane.b32.xlu0 %v679, 1
    %v707 = vpop.permute.xlu0 %706
    %708 = vrot.lane.b32.xlu0 %v680, 1
    %v709 = vpop.permute.xlu0 %708
    %710 = vrot.lane.b32.xlu0 %v681, 1
    %v711 = vpop.permute.xlu0 %710
    %712 = vrot.lane.b32.xlu0 %v682, 1
    %v713 = vpop.permute.xlu0 %712
    %714 = vrot.lane.b32.xlu0 %v683, 1
    %v715 = vpop.permute.xlu0 %714
    %716 = vrot.lane.b32.xlu0 %v684, 1
    %v717 = vpop.permute.xlu0 %716
    %718 = vrot.lane.b32.xlu0 %v685, 1
    %v719 = vpop.permute.xlu0 %718
    %728 = vst.msk [vmem:[%s686 + $0x1] sm:$0xff] %vm231, %v705
    %729 = vst.msk [vmem:[%s686 + $0x9] sm:$0xff] %vm231, %v707
    %730 = vst.msk [vmem:[%s686 + $0x11] sm:$0xff] %vm231, %v709
    %731 = vst.msk [vmem:[%s686 + $0x19] sm:$0xff] %vm231, %v711
    %732 = vst.msk [vmem:[%s686 + $0x21] sm:$0xff] %vm231, %v713
    %733 = vst.msk [vmem:[%s686 + $0x29] sm:$0xff] %vm231, %v715
    %734 = vst.msk [vmem:[%s686 + $0x31] sm:$0xff] %vm231, %v717
    %735 = vst.msk [vmem:[%s686 + $0x39] sm:$0xff] %vm231, %v719
    // Predicated region
    $region10: #{tpu_custom_call.1} parent=1 // pred_check
      _
    $region11: #{tpu_custom_call.1} parent=1 // pred_check_branch
      %737 = sbr.rel (0) target = $region13
    $region12: #{tpu_custom_call.1} parent=1 // pred_region
      _
    $region13: #{tpu_custom_call.1} parent=1 // pred_fallthru
      _
    // Predicated region
    $region14: #{tpu_custom_call.1} parent=1 // pred_check
      _
    $region15: #{tpu_custom_call.1} parent=1 // pred_check_branch
      %739 = sbr.rel (0) target = $region17
    $region16: #{tpu_custom_call.1} parent=1 // pred_region
      _
    $region17: #{tpu_custom_call.1} parent=1 // pred_fallthru
      _
    %740 = vsyncpa [#allocation6], 1

</llo_original>
